<compile_context>
chip_gen: v5e
topology: v5e:2x2
jax: 0.10.0
libtpu: 0.0.40
codegen_flags: <defaults>
</compile_context>

<pallas_src>
import jax
import jax.numpy as jnp
from jax.experimental import pallas as pl
from jax.experimental.pallas import tpu as pltpu


def _round_up(x, m):
    return ((x + m - 1) // m) * m


def _vmem_capacity_bytes():
    try:
        return int(pltpu.get_tpu_info().vmem_capacity_bytes)
    except Exception:
        return 64 * 1024 * 1024  # conservative fallback (v7x per-TC)


def _gelu_tanh(x):
    # megablocks.layers.gelu uses the tanh approximation of GELU.
    c = 0.7978845608028654  # sqrt(2/pi)
    return 0.5 * x * (1.0 + jnp.tanh(c * (x + 0.044715 * x * x * x)))


# ------------------------------ Router kernel ------------------------------- #
def router_scores(x_flat_bf16, w_router, num_experts, *, tm=256):
    """logits = x @ W_router, row softmax (LearnedRouter, no bias).

    Fixed token tile (cdiv grid, zero-padded T), expert dim padded to 128 lanes
    (lane-dense stores) and masked to -inf before the f32 softmax; bf16 matmul
    inputs.
    """
    T, H = x_flat_bf16.shape
    E = num_experts
    e_pad = _round_up(max(E, 128), 128)
    w_pad = jnp.zeros((H, e_pad), jnp.bfloat16).at[:, :E].set(
        w_router.astype(jnp.bfloat16))

    tm = min(tm, _round_up(T, 8))
    T_pad = _round_up(T, tm)
    x_pad = x_flat_bf16 if T_pad == T else jnp.pad(
        x_flat_bf16, ((0, T_pad - T), (0, 0)))

    def kernel(x_ref, w_ref, s_ref):
        logits = jnp.dot(x_ref[...], w_ref[...],
                         preferred_element_type=jnp.float32)
        col = jax.lax.broadcasted_iota(jnp.int32, logits.shape, 1)
        logits = jnp.where(col < E, logits, -1e30)
        mx = jnp.max(logits, axis=-1, keepdims=True)
        ex = jnp.exp(logits - mx)
        s_ref[...] = ex / jnp.sum(ex, axis=-1, keepdims=True)

    scores = pl.pallas_call(
        kernel,
        out_shape=jax.ShapeDtypeStruct((T_pad, e_pad), jnp.float32),
        grid=(T_pad // tm,),
        in_specs=[pl.BlockSpec((tm, H), lambda i: (i, 0)),
                  pl.BlockSpec((H, e_pad), lambda i: (0, 0))],
        out_specs=pl.BlockSpec((tm, e_pad), lambda i: (i, 0)),
        compiler_params=pltpu.CompilerParams(
            dimension_semantics=("parallel",)),
    )(x_pad, w_pad)
    return scores[:T, :E]


# ----------------------------- Expert MLP kernel ---------------------------- #
def _expert_kernel_single_f(x_ref, w1_ref, w2_ref, o_ref):
    # Full F resident: no reduction axis, no accumulator -- store straight to o_ref.
    h = jnp.dot(x_ref[...], w1_ref[...], preferred_element_type=jnp.float32)
    h = _gelu_tanh(h)
    o_ref[...] = jnp.dot(h.astype(jnp.bfloat16), w2_ref[...],
                         preferred_element_type=jnp.float32).astype(o_ref.dtype)


def _expert_kernel_multi_f(x_ref, w1_ref, w2_ref, o_ref, acc_ref):
    # y = sum_f gelu(x @ W1[:, f-tile]) @ W2[f-tile, :]  (exact decomposition).
    f = pl.program_id(2)

    @pl.when(f == 0)
    def _init():
        acc_ref[...] = jnp.zeros_like(acc_ref)

    h = jnp.dot(x_ref[...], w1_ref[...], preferred_element_type=jnp.float32)
    h = _gelu_tanh(h)
    acc_ref[...] += jnp.dot(h.astype(jnp.bfloat16), w2_ref[...],
                            preferred_element_type=jnp.float32)

    @pl.when(f == pl.num_programs(2) - 1)
    def _store():
        o_ref[...] = acc_ref[...].astype(o_ref.dtype)


def _pick_expert_tiles(H, F, capacity, out_itemsize=2):
    """Generation-aware tile selection: n_m == 1 and n_f == 1 whenever VMEM allows,
    256-aligned tf otherwise, and a vmem limit derived from physical capacity."""
    vmem_cap = _vmem_capacity_bytes()
    vmem_limit = min(int(0.75 * vmem_cap), vmem_cap - (8 << 20))
    budget = int(0.55 * vmem_cap)  # what our (double-buffered) blocks may occupy

    def w_block_bytes(tf):
        # double-buffered bf16 W1 + W2 blocks
        return 2 * (H * tf + tf * H) * 2

    if w_block_bytes(F) <= budget // 2:
        tf = F                              # hold full per-expert weights resident
    else:
        tf = None
        for cand in (2048, 1024, 512, 256):  # 256-aligned first (v6e/v7x MXU)
            if F % cand == 0 and w_block_bytes(cand) <= budget // 2:
                tf = cand
                break
        if tf is None:
            tf = 128 if F % 128 == 0 else F

    n_f = F // tf
    multi_f = n_f > 1

    def m_block_bytes(tm):
        b = 2 * tm * H * 2               # double-buffered bf16 x blocks
        b += 2 * tm * H * out_itemsize   # double-buffered output blocks
        b += tm * tf * 4                 # f32 GELU temp
        if multi_f:
            b += tm * H * 4              # f32 accumulator scratch
        return b

    rem = budget - w_block_bytes(tf)
    if capacity >= 128:
        tm = _round_up(capacity, 128)    # prefer n_m == 1 (no weight re-streaming)
        while tm > 128 and m_block_bytes(tm) > rem:
            tm = _round_up(tm // 2, 128)
    else:
        tm = _round_up(max(capacity, 8), 8)
    c_pad = _round_up(capacity, tm)
    return tm, tf, c_pad, vmem_limit


def expert_mlp_binned(x_binned, w1_bf16, w2_bf16, *, tm, tf,
                      out_dtype=jnp.bfloat16, vmem_limit_bytes=48 * 1024 * 1024):
    """Per-expert MLP on binned tokens.

    Grid (E, C//TM [, F//TF]); bf16 MXU inputs, f32 accumulation; E/M parallel
    (megacore), F (when tiled) arbitrary with a resident f32 accumulator.
    """
    E, c_pad, H = x_binned.shape
    F = w1_bf16.shape[2]
    n_m = c_pad // tm
    n_f = F // tf

    cost = pl.CostEstimate(
        flops=4 * E * c_pad * H * F,                       # two GEMMs
        transcendentals=E * c_pad * F,                     # tanh in gelu
        bytes_accessed=(E * c_pad * H * 2                  # x_binned read (bf16)
                        + n_m * 2 * E * H * F * 2          # weights (per m-tile)
                        + E * c_pad * H * jnp.dtype(out_dtype).itemsize))

    if n_f == 1:
        return pl.pallas_call(
            _expert_kernel_single_f,
            out_shape=jax.ShapeDtypeStruct((E, c_pad, H), out_dtype),
            grid=(E, n_m),
            in_specs=[
                pl.BlockSpec((None, tm, H), lambda e, m: (e, m, 0)),
                pl.BlockSpec((None, H, F), lambda e, m: (e, 0, 0)),
                pl.BlockSpec((None, F, H), lambda e, m: (e, 0, 0)),
            ],
            out_specs=pl.BlockSpec((None, tm, H), lambda e, m: (e, m, 0)),
            compiler_params=pltpu.CompilerParams(
                dimension_semantics=("parallel", "parallel"),
                vmem_limit_bytes=vmem_limit_bytes),
            cost_estimate=cost,
        )(x_binned, w1_bf16, w2_bf16)

    return pl.pallas_call(
        _expert_kernel_multi_f,
        out_shape=jax.ShapeDtypeStruct((E, c_pad, H), out_dtype),
        grid=(E, n_m, n_f),
        in_specs=[
            pl.BlockSpec((None, tm, H), lambda e, m, f: (e, m, 0)),
            pl.BlockSpec((None, H, tf), lambda e, m, f: (e, 0, f)),
            pl.BlockSpec((None, tf, H), lambda e, m, f: (e, f, 0)),
        ],
        out_specs=pl.BlockSpec((None, tm, H), lambda e, m, f: (e, m, 0)),
        scratch_shapes=[pltpu.VMEM((tm, H), jnp.float32)],  # f32 accumulator
        compiler_params=pltpu.CompilerParams(
            dimension_semantics=("parallel", "parallel", "arbitrary"),
            vmem_limit_bytes=vmem_limit_bytes),
        cost_estimate=cost,
    )(x_binned, w1_bf16, w2_bf16)


# -------------------------------- MoE forward ------------------------------- #
def moe_forward(x, params, *, num_experts, top_k, capacity_factor=1.0):
    """Equivalent of MoE.forward (forward_once path, world_size == 1).

    Returns (y, bias, tokens_per_expert); bias is the zero-initialized
    (1, 1, hidden) parameter (returned, not added), matching the PyTorch module.
    """
    sl, bs, hs = x.shape
    T = sl * bs
    x_flat = x.reshape(T, hs)
    x_bf16 = x_flat.astype(jnp.bfloat16)

    # Router: softmax scores + top-k experts (no weight renormalization --
    # matches megablocks with moe_normalize_expert_weights unset).
    scores = router_scores(x_bf16, params["w_router"], num_experts)    # (T, E) f32
    expert_weights, top_experts = jax.lax.top_k(scores, top_k)         # (T, k)
    te = top_experts.reshape(-1).astype(jnp.int32)                     # token-major flat
    w_flat = expert_weights.reshape(-1).astype(jnp.float32)

    # indices_and_bins: stable sort by expert id, histogram, inclusive cumsum.
    order = jnp.argsort(te, stable=True).astype(jnp.int32)             # "indices"
    tokens_per_expert = jnp.zeros((num_experts,), jnp.int32).at[te].add(1)
    bins = jnp.cumsum(tokens_per_expert)
    starts = (bins - tokens_per_expert).astype(jnp.int32)

    # expert_capacity = int(capacity_factor * top_k * tokens / num_experts)
    capacity = int(capacity_factor * top_k * T / num_experts)
    if capacity == 0:
        # TODO(synk): PyTorch falls back to max(tokens_per_expert).item() (data
        # dependent); use the static worst case instead.
        capacity = T

    F = params["w1"].shape[2]
    tm, tf, c_pad, vmem_limit = _pick_expert_tiles(hs, F, capacity)

    # binned_gather: materialize x_binned with one XLA gather (row-DMA gather is
    # descriptor/latency-bound for small H); rows past each expert's valid count
    # (capacity dropping) are zeroed here.
    # TODO(synk): for H >= ~2048 fuse a per-row DMA gather into the expert kernel
    # (double-buffered across m-tiles) to avoid this (E, C, H) intermediate.
    p_idx = jnp.arange(c_pad, dtype=jnp.int32)[None, :]                # (1, C)
    sorted_pos = jnp.minimum(starts[:, None] + p_idx, T * top_k - 1)
    src_tok = (order[sorted_pos] // top_k).astype(jnp.int32)           # (E, C)
    nvalid = jnp.minimum(tokens_per_expert, capacity)
    valid_slot = p_idx < nvalid[:, None]                               # (E, C)
    x_binned = jnp.where(valid_slot[:, :, None],
                         x_bf16[src_tok], jnp.bfloat16(0))             # (E, C, H)

    y = expert_mlp_binned(
        x_binned,
        params["w1"].astype(jnp.bfloat16),
        params["w2"].astype(jnp.bfloat16),
        tm=tm, tf=tf, out_dtype=jnp.bfloat16,
        vmem_limit_bytes=vmem_limit)                                   # (E, C, H) bf16

    # binned_scatter, collision-free: for each flattened (token, k) slot gather its
    # expert output, weight it in f32, and reduce densely over k (no scatter-add).
    inv_order = jnp.zeros((T * top_k,), jnp.int32).at[order].set(
        jnp.arange(T * top_k, dtype=jnp.int32))
    p_of = inv_order - starts[te]                                      # pos in bin
    valid = p_of < capacity                                            # capacity drop
    gidx = te * c_pad + jnp.minimum(p_of, c_pad - 1)
    per_k = jnp.where(valid[:, None],
                      y.reshape(num_experts * c_pad, hs)[gidx].astype(jnp.float32),
                      0.0)
    out = (per_k * w_flat[:, None]).reshape(T, top_k, hs).sum(axis=1)

    return (out.reshape(sl, bs, hs).astype(x.dtype),
            params["bias"], tokens_per_expert)


# ----------------------------------- main ----------------------------------- #
if __name__ == "__main__":
    sl, bs, hs = 32, 16, 128
    ffn_hidden = 1024
    num_experts = 4
    top_k = 2

    key = jax.random.PRNGKey(0)
    k_x, k_r, k_w1, k_w2 = jax.random.split(key, 4)

    x = jax.random.normal(k_x, (sl, bs, hs), dtype=jnp.float32)
    params = {
        # LearnedRouter: Linear(hidden_size, num_experts, bias=False)
        "w_router": 0.02 * jax.random.normal(k_r, (hs, num_experts), jnp.float32),
        # MLP: w1 (E, hidden, ffn), w2 (E, ffn, hidden)
        "w1": 0.02 * jax.random.normal(
            k_w1, (num_experts, hs, ffn_hidden), jnp.float32),
        "w2": 0.02 * jax.random.normal(
            k_w2, (num_experts, ffn_hidden, hs), jnp.float32),
        # bias parameter initialized to zeros (returned, not added)
        "bias": jnp.zeros((1, 1, hs), jnp.float32),
    }

    y, bias, tokens_per_expert = moe_forward(
        x, params, num_experts=num_experts, top_k=top_k, capacity_factor=1.0)
    jax.block_until_ready(y)

    assert y.shape == (sl, bs, hs)
    assert bias.shape == (1, 1, hs)
    assert tokens_per_expert.shape == (num_experts,)
    assert int(tokens_per_expert.sum()) == sl * bs * top_k
    assert bool(jnp.all(jnp.isfinite(y)))
    print("KERNEL_OK")
</pallas_src>

<mosaic_0001>
module attributes {stable_mosaic.version = 11 : i64} {
  func.func @kernel(%arg0: i32, %arg1: memref<256x128xbf16, #tpu.memory_space<vmem>>, %arg2: memref<128x128xbf16, #tpu.memory_space<vmem>>, %arg3: memref<256x128xf32, #tpu.memory_space<vmem>>) attributes {dimension_semantics = [#tpu.dimension_semantics<parallel>], iteration_bounds = array<i64: 2>, scalar_prefetch = 0 : i64, scratch_operands = 0 : i64, tpu.core_type = #tpu.core_type<tc>, window_params = [{transform_indices = @transform_0, window_bounds = array<i64: 256, 128>}, {pipeline_mode = #tpu.pipeline_mode<synchronous>, transform_indices = @transform_1, window_bounds = array<i64: 128, 128>}, {transform_indices = @transform_2, window_bounds = array<i64: 256, 128>}]} {
    %c0 = arith.constant 0 : index
    %c0_0 = arith.constant 0 : index
    %0 = vector.load %arg1[%c0, %c0_0] : memref<256x128xbf16, #tpu.memory_space<vmem>>, vector<256x128xbf16>
    %c0_1 = arith.constant 0 : index
    %c0_2 = arith.constant 0 : index
    %1 = vector.load %arg2[%c0_1, %c0_2] : memref<128x128xbf16, #tpu.memory_space<vmem>>, vector<128x128xbf16>
    %cst = arith.constant dense<0.000000e+00> : vector<256x128xf32>
    %2 = tpu.matmul %0, %1, %cst {dimension_numbers = #tpu.dot_dimension_numbers<[1], [0], [0], [1], [0, 0, 1, 1], [], []>} : vector<256x128xbf16>, vector<128x128xbf16>, vector<256x128xf32> -> vector<256x128xf32>
    %3 = tpu.iota {dimensions = array<i32: 1>} : vector<256x128xi32>
    %c4_i32 = arith.constant 4 : i32
    %4 = vector.broadcast %c4_i32 : i32 to vector<256x128xi32>
    %5 = arith.cmpi slt, %3, %4 : vector<256x128xi32>
    %cst_3 = arith.constant -1.000000e+30 : f32
    %6 = vector.broadcast %cst_3 : f32 to vector<256x128xf32>
    %7 = arith.select %5, %2, %6 : vector<256x128xi1>, vector<256x128xf32>
    %cst_4 = arith.constant dense<0xFF800000> : vector<256xf32>
    %8 = vector.multi_reduction <maximumf>, %7, %cst_4 [1] : vector<256x128xf32> to vector<256xf32>
    %9 = vector.shape_cast %8 : vector<256xf32> to vector<256x1xf32>
    %10 = vector.broadcast %9 : vector<256x1xf32> to vector<256x128xf32>
    %11 = arith.subf %7, %10 : vector<256x128xf32>
    %12 = math.exp %11 : vector<256x128xf32>
    %cst_5 = arith.constant dense<0.000000e+00> : vector<256xf32>
    %13 = vector.multi_reduction <add>, %12, %cst_5 [1] : vector<256x128xf32> to vector<256xf32>
    %14 = vector.shape_cast %13 : vector<256xf32> to vector<256x1xf32>
    %15 = vector.broadcast %14 : vector<256x1xf32> to vector<256x128xf32>
    %16 = arith.divf %12, %15 : vector<256x128xf32>
    %c0_6 = arith.constant 0 : index
    %c0_7 = arith.constant 0 : index
    %17 = vector.load %arg3[%c0_6, %c0_7] : memref<256x128xf32, #tpu.memory_space<vmem>>, vector<256x128xf32>
    tpu.vector_store %arg3[%c0_6, %c0_7], %16 {strides = array<i32>} : memref<256x128xf32, #tpu.memory_space<vmem>>, vector<256x128xf32>,
    return
  }
  func.func @transform_0(%arg0: i32) -> (i32, i32) {
    %c0_i32 = arith.constant 0 : i32
    %c0_i32_0 = arith.constant 0 : i32
    return %arg0, %c0_i32 : i32, i32
  }
  func.func @transform_1(%arg0: i32) -> (i32, i32) {
    %c0_i32 = arith.constant 0 : i32
    %c0_i32_0 = arith.constant 0 : i32
    %c0_i32_1 = arith.constant 0 : i32
    return %c0_i32, %c0_i32_0 : i32, i32
  }
  func.func @transform_2(%arg0: i32) -> (i32, i32) {
    %c0_i32 = arith.constant 0 : i32
    %c0_i32_0 = arith.constant 0 : i32
    return %arg0, %c0_i32 : i32, i32
  }
}

</mosaic_0001>

<llo_original>
// kernel: tpu_custom_call.1
$region0: #{tpu_custom_call.1}
  #allocation0 [shape = 'u32[]', space=smem, size = 0x4, offset = 0x4, fixed_abs, tag = 'smem constant byte address 0x4 - core index']
  #allocation1 [shape = 'u32[72,128]{1,0:T(1,128)}', space=vmem, size = 0x9000, scoped, tag = 'internal scratch']
  %s0 = inlined_call_operand.hbm [shape: bf16[512,128], index: 0, kind: input, shape index: {}]
  %s1 = inlined_call_operand.hbm [shape: bf16[128,128], index: 1, kind: input, shape index: {}]
  %s2 = inlined_call_operand.hbm [shape: f32[512,128], index: 2, kind: output, shape index: {}]
  %s3 = sld [smem:[#allocation0]]
  $region49: #{tpu_custom_call.1} parent=0
    _
  %s5 = ssub.s32 1, %s3
  %s6 = scalar_select 0, %s5, %s3
  $region1: #{tpu_custom_call.1} parent=0
    #allocation2 [shape = 'u8[131072]{0}', space=vmem, size = 0x20000, scoped, tag = 'input window, operand 0']
    #allocation3 [shape = 's32[2]{0}', space=sflag, size = 0x8, scoped, tag = 'scoped memory for tpu_custom_call.1']
    #allocation4 [shape = 's32[2]{0}', space=sflag, size = 0x8, scoped, tag = 'scoped memory for tpu_custom_call.1']
    #allocation5 [shape = 'u8[32768]{0}', space=vmem, size = 0x8000, scoped, tag = 'input window, operand 1, single buffered']
    #allocation6 [shape = 's32[1]{0}', space=sflag, size = 0x4, scoped, tag = 'scoped memory for tpu_custom_call.1']
    #allocation7 [shape = 'u8[262144]{0}', space=vmem, size = 0x40000, scoped, tag = 'output window, operand 0']
    %7 = vsyncpa [#allocation3], 0
    %s8 = scalar_lea.sflag [#allocation3], 1
    %9 = vsyncpa %s8, 0
    %10 = vsyncpa [#allocation6], 0
    %11 = vsyncpa [#allocation4], 0
    %s12 = scalar_lea.sflag [#allocation4], 1
    %13 = vsyncpa %s12, 0
    loop: start=0, step=1, limit=4
    $region2: #{tpu_custom_call.1} parent=1 // loop_pre_header
      _
    $region3: #{tpu_custom_call.1} parent=1 // loop_header
      %s15 = sphi 0, %s19
      %p16 = scmp.ge.s32.totalorder %s15, 4
      %s25 = sphi 0, %s27
      %s28 = sphi 0, %s25
      %s29 = sphi 0, %s28
      %s45 = sphi 0, %s29
      %s49 = sphi 0, %s49
      %s51 = sphi 0, %s49
      %s52 = sphi 0, %s51
      %s66 = sphi 0, %s52
      %s72 = sphi 0, %s74
      %s75 = sphi 0, %s72
      %s76 = sphi 0, %s75
      %s92 = sphi 0, %s76
    $region4: #{tpu_custom_call.1} parent=1 // loop_header_branch
      %18 = sbr.rel (%p16) target = $region8
    $region5: #{tpu_custom_call.1} parent=1 // loop_body
      %s20 = ssub.s32 %s15, 1
      %s21 = ssub.s32 %s15, 2
      %s22 = sadd.s32 %s15, 1
      %s23 = ssub.s32 %s15, %s22
      %p24 = scmp.eq.s32.totalorder %s23, 0
      %s26 = sadd.s32 %s25, 1
      %s27 = scalar_select %p24, %s25, %s26
      %p30 = pneg %p24
      %p31 = scmp.eq.s32.totalorder %s15, 1
      %p32 = por %p30, %p31
      %p33 = scmp.ne.s32.totalorder %s25, %s28
      %p34 = scmp.eq.s32.totalorder %s15, 0
      %p35 = por %p33, %p34
      %p36 = scmp.ne.s32.totalorder %s25, %s28
      %p37 = scmp.eq.s32.totalorder %s20, 1
      %p38 = por %p36, %p37
      %p39 = scmp.ne.s32.totalorder %s28, %s29
      %p40 = scmp.eq.s32.totalorder %s20, 0
      %p41 = por %p39, %p40
      %p42 = scmp.ne.s32.totalorder %s28, %s29
      %p43 = scmp.eq.s32.totalorder %s21, 1
      %p44 = por %p42, %p43
      %p46 = scmp.ne.s32.totalorder %s29, %s45
      %p47 = scmp.eq.s32.totalorder %s21, 0
      %p48 = por %p46, %p47
      %s50 = sadd.s32 %s49, 1
      %p53 = scmp.eq.s32.totalorder %s15, 1
      %p54 = scmp.ne.s32.totalorder %s49, %s51
      %p55 = scmp.eq.s32.totalorder %s15, 0
      %p56 = por %p54, %p55
      %p57 = scmp.ne.s32.totalorder %s49, %s51
      %p58 = scmp.eq.s32.totalorder %s20, 1
      %p59 = por %p57, %p58
      %p60 = scmp.ne.s32.totalorder %s51, %s52
      %p61 = scmp.eq.s32.totalorder %s20, 0
      %p62 = por %p60, %p61
      %p63 = scmp.ne.s32.totalorder %s51, %s52
      %p64 = scmp.eq.s32.totalorder %s21, 1
      %p65 = por %p63, %p64
      %p67 = scmp.ne.s32.totalorder %s52, %s66
      %p68 = scmp.eq.s32.totalorder %s21, 0
      %p69 = por %p67, %p68
      %s70 = ssub.s32 %s15, %s22
      %p71 = scmp.eq.s32.totalorder %s70, 0
      %s73 = sadd.s32 %s72, 1
      %s74 = scalar_select %p71, %s72, %s73
      %p77 = pneg %p71
      %p78 = scmp.eq.s32.totalorder %s15, 1
      %p79 = por %p77, %p78
      %p80 = scmp.ne.s32.totalorder %s72, %s75
      %p81 = scmp.eq.s32.totalorder %s15, 0
      %p82 = por %p80, %p81
      %p83 = scmp.ne.s32.totalorder %s72, %s75
      %p84 = scmp.eq.s32.totalorder %s20, 1
      %p85 = por %p83, %p84
      %p86 = scmp.ne.s32.totalorder %s75, %s76
      %p87 = scmp.eq.s32.totalorder %s20, 0
      %p88 = por %p86, %p87
      %p89 = scmp.ne.s32.totalorder %s75, %s76
      %p90 = scmp.eq.s32.totalorder %s21, 1
      %p91 = por %p89, %p90
      %p93 = scmp.ne.s32.totalorder %s76, %s92
      %p94 = scmp.eq.s32.totalorder %s21, 0
      %p95 = por %p93, %p94
      %p96 = scmp.le.s32.totalorder 1, %s15
      %p97 = scmp.lt.s32.totalorder %s15, 3
      %p98 = pnand %p96, %p97
      %p99 = pneg %p98
      // Predicated region
      $region9: #{tpu_custom_call.1} parent=5 // pred_check
        _
      $region10: #{tpu_custom_call.1} parent=5 // pred_check_branch
        %101 = sbr.rel (%p98) target = $region12
      $region11: #{tpu_custom_call.1} parent=5 // pred_region
        %s102 = ssub.s32 %s15, 1
        // Predicated region
        $region13: #{tpu_custom_call.1} parent=11 // pred_check
          %p103 = pneg %p62
        $region14: #{tpu_custom_call.1} parent=11 // pred_check_branch
          %105 = sbr.rel (%p103) target = $region16
        $region15: #{tpu_custom_call.1} parent=11 // pred_region
          %107 = vsyncadd [#allocation6], 0
          %s108 = sshll.u32 %s1, 4
          %s109 = int_to_ptr.hbm [resolvable:$true] %s108
          %s110 = sshll.u32 [#allocation5], 4
          %s111 = int_to_ptr.vmem [resolvable:$true] %s110
          %116 = dma.hbm_to_vmem [thread:$0]  %s109, 1024, %s111, [#allocation6], 64, 64, 4
        $region16: #{tpu_custom_call.1} parent=11 // pred_fallthru
          _
      $region12: #{tpu_custom_call.1} parent=5 // pred_fallthru
        _
      %p117 = scmp.lt.s32.totalorder %s15, 2
      // Predicated region
      $region17: #{tpu_custom_call.1} parent=5 // pred_check
        %p118 = pneg %p117
      $region18: #{tpu_custom_call.1} parent=5 // pred_check_branch
        %120 = sbr.rel (%p118) target = $region20
      $region19: #{tpu_custom_call.1} parent=5 // pred_region
        // Predicated region
        $region21: #{tpu_custom_call.1} parent=19 // pred_check
          %p121 = pneg %p35
        $region22: #{tpu_custom_call.1} parent=19 // pred_check_branch
          %123 = sbr.rel (%p121) target = $region24
        $region23: #{tpu_custom_call.1} parent=19 // pred_region
          %s124 = sand.u32 %s25, 1
          %s125 = scalar_lea.sflag [#allocation3], %s124
          %s126 = sand.u32 %s25, 1
          %s127 = smul.addr %s126, 128
          %s128 = scalar_lea.vmem [#allocation2], %s127
          %s129 = smul.u32 32, %s15
          %131 = vsyncadd %s125, 0
          %s132 = smul.addr %s129, 4
          %s133 = scalar_lea.hbm %s0, %s132
          %s134 = sshll.u32 %s133, 4
          %s135 = int_to_ptr.hbm [resolvable:$true] %s134
          %s136 = sshll.u32 %s128, 4
          %s137 = int_to_ptr.vmem [resolvable:$true] %s136
          %142 = dma.hbm_to_vmem [thread:$0]  %s135, 2048, %s137, %s125, 64, 64, 4
        $region24: #{tpu_custom_call.1} parent=19 // pred_fallthru
          _
      $region20: #{tpu_custom_call.1} parent=5 // pred_fallthru
        _
      %p143 = scmp.le.s32.totalorder 1, %s15
      %p144 = scmp.lt.s32.totalorder %s15, 3
      %p145 = pnand %p143, %p144
      %p146 = pneg %p145
      // Predicated region
      $region25: #{tpu_custom_call.1} parent=5 // pred_check
        _
      $region26: #{tpu_custom_call.1} parent=5 // pred_check_branch
        %148 = sbr.rel (%p145) target = $region28
      $region27: #{tpu_custom_call.1} parent=5 // pred_region
        %s149 = ssub.s32 %s15, 1
        %s150 = sand.u32 %s28, 1
        %s151 = scalar_lea.sflag [#allocation3], %s150
        %s152 = sand.u32 %s28, 1
        %s153 = smul.addr %s152, 128
        %s154 = scalar_lea.vmem [#allocation2], %s153
        // Predicated region
        $region29: #{tpu_custom_call.1} parent=27 // pred_check
          %p155 = pneg %p41
        $region30: #{tpu_custom_call.1} parent=27 // pred_check_branch
          %157 = sbr.rel (%p155) target = $region32
        $region31: #{tpu_custom_call.1} parent=27 // pred_region
          %159 = dma.done %s151, 2048
        $region32: #{tpu_custom_call.1} parent=27 // pred_fallthru
          _
        // Predicated region
        $region33: #{tpu_custom_call.1} parent=27 // pred_check
          %p160 = pneg %p62
        $region34: #{tpu_custom_call.1} parent=27 // pred_check_branch
          %162 = sbr.rel (%p160) target = $region36
        $region35: #{tpu_custom_call.1} parent=27 // pred_region
          %164 = dma.done [#allocation6], 1024
        $region36: #{tpu_custom_call.1} parent=27 // pred_fallthru
          _
        %s165 = sand.u32 %s28, 1
        %s166 = scalar_lea.sflag [#allocation3], %s165
        %s167 = sand.u32 %s28, 1
        %s168 = smul.addr %s167, 128
        %s169 = scalar_lea.vmem [#allocation2], %s168
        %p170 = pneg %p41
        %p171 = pneg %p38
        %p172 = pneg %p62
        %p173 = pneg %p59
        %p174 = pneg %p88
        %p175 = pneg %p85
        %s176 = sand.u32 %s75, 1
        %s177 = scalar_lea.sflag [#allocation4], %s176
        %s178 = sand.u32 %s75, 1
        %s179 = smul.addr %s178, 256
        %s180 = scalar_lea.vmem [#allocation7], %s179
        %s181 = smul.u32 32, %s20
        %s182 = smul.u32 32, %s20
        %v183 = vld [vmem:[%s154] sm:$0xf]
        %v184 = vld [vmem:[%s154 + $0x4] sm:$0xf]
        %v185 = vld [vmem:[%s154 + $0x8] sm:$0xf]
        %v186 = vld [vmem:[%s154 + $0xc] sm:$0xf]
        %v187 = vld [vmem:[%s154 + $0x10] sm:$0xf]
        %v188 = vld [vmem:[%s154 + $0x14] sm:$0xf]
        %v189 = vld [vmem:[%s154 + $0x18] sm:$0xf]
        %v190 = vld [vmem:[%s154 + $0x1c] sm:$0xf]
        %v191 = vld [vmem:[%s154 + $0x20] sm:$0xf]
        %v192 = vld [vmem:[%s154 + $0x24] sm:$0xf]
        %v193 = vld [vmem:[%s154 + $0x28] sm:$0xf]
        %v194 = vld [vmem:[%s154 + $0x2c] sm:$0xf]
        %v195 = vld [vmem:[%s154 + $0x30] sm:$0xf]
        %v196 = vld [vmem:[%s154 + $0x34] sm:$0xf]
        %v197 = vld [vmem:[%s154 + $0x38] sm:$0xf]
        %v198 = vld [vmem:[%s154 + $0x3c] sm:$0xf]
        %v199 = vld [vmem:[%s154 + $0x40] sm:$0xf]
        %v200 = vld [vmem:[%s154 + $0x44] sm:$0xf]
        %v201 = vld [vmem:[%s154 + $0x48] sm:$0xf]
        %v202 = vld [vmem:[%s154 + $0x4c] sm:$0xf]
        %v203 = vld [vmem:[%s154 + $0x50] sm:$0xf]
        %v204 = vld [vmem:[%s154 + $0x54] sm:$0xf]
        %v205 = vld [vmem:[%s154 + $0x58] sm:$0xf]
        %v206 = vld [vmem:[%s154 + $0x5c] sm:$0xf]
        %v207 = vld [vmem:[%s154 + $0x60] sm:$0xf]
        %v208 = vld [vmem:[%s154 + $0x64] sm:$0xf]
        %v209 = vld [vmem:[%s154 + $0x68] sm:$0xf]
        %v210 = vld [vmem:[%s154 + $0x6c] sm:$0xf]
        %v211 = vld [vmem:[%s154 + $0x70] sm:$0xf]
        %v212 = vld [vmem:[%s154 + $0x74] sm:$0xf]
        %v213 = vld [vmem:[%s154 + $0x78] sm:$0xf]
        %v214 = vld [vmem:[%s154 + $0x7c] sm:$0xf]
        %v215 = vld [vmem:[#allocation5] sm:$0xf]
        %v216 = vld [vmem:[#allocation5 + $0x4] sm:$0xf]
        %v217 = vld [vmem:[#allocation5 + $0x8] sm:$0xf]
        %v218 = vld [vmem:[#allocation5 + $0xc] sm:$0xf]
        %v219 = vld [vmem:[#allocation5 + $0x10] sm:$0xf]
        %v220 = vld [vmem:[#allocation5 + $0x14] sm:$0xf]
        %v221 = vld [vmem:[#allocation5 + $0x18] sm:$0xf]
        %v222 = vld [vmem:[#allocation5 + $0x1c] sm:$0xf]
        %v223 = vld [vmem:[#allocation5 + $0x20] sm:$0xf]
        %v224 = vld [vmem:[#allocation5 + $0x24] sm:$0xf]
        %v225 = vld [vmem:[#allocation5 + $0x28] sm:$0xf]
        %v226 = vld [vmem:[#allocation5 + $0x2c] sm:$0xf]
        %v227 = vld [vmem:[#allocation5 + $0x30] sm:$0xf]
        %v228 = vld [vmem:[#allocation5 + $0x34] sm:$0xf]
        %v229 = vld [vmem:[#allocation5 + $0x38] sm:$0xf]
        %v230 = vld [vmem:[#allocation5 + $0x3c] sm:$0xf]
        %v263 = vunpack.c.l.b16 %v183
        %v264 = vunpack.c.l.b16 %v184
        %v265 = vunpack.c.l.b16 %v185
        %v266 = vunpack.c.l.b16 %v186
        %v267 = vunpack.c.l.b16 %v187
        %v268 = vunpack.c.l.b16 %v188
        %v269 = vunpack.c.l.b16 %v189
        %v270 = vunpack.c.l.b16 %v190
        %v271 = vunpack.c.l.b16 %v191
        %v272 = vunpack.c.l.b16 %v192
        %v273 = vunpack.c.l.b16 %v193
        %v274 = vunpack.c.l.b16 %v194
        %v275 = vunpack.c.l.b16 %v195
        %v276 = vunpack.c.l.b16 %v196
        %v277 = vunpack.c.l.b16 %v197
        %v278 = vunpack.c.l.b16 %v198
        %v279 = vunpack.c.l.b16 %v199
        %v280 = vunpack.c.l.b16 %v200
        %v281 = vunpack.c.l.b16 %v201
        %v282 = vunpack.c.l.b16 %v202
        %v283 = vunpack.c.l.b16 %v203
        %v284 = vunpack.c.l.b16 %v204
        %v285 = vunpack.c.l.b16 %v205
        %v286 = vunpack.c.l.b16 %v206
        %v287 = vunpack.c.l.b16 %v207
        %v288 = vunpack.c.l.b16 %v208
        %v289 = vunpack.c.l.b16 %v209
        %v290 = vunpack.c.l.b16 %v210
        %v291 = vunpack.c.l.b16 %v211
        %v292 = vunpack.c.l.b16 %v212
        %v293 = vunpack.c.l.b16 %v213
        %v294 = vunpack.c.l.b16 %v214
        %v295 = vpack.c.b16 %v264, %v263
        %v296 = vpack.c.b16 %v266, %v265
        %v297 = vpack.c.b16 %v268, %v267
        %v298 = vpack.c.b16 %v270, %v269
        %v299 = vpack.c.b16 %v272, %v271
        %v300 = vpack.c.b16 %v274, %v273
        %v301 = vpack.c.b16 %v276, %v275
        %v302 = vpack.c.b16 %v278, %v277
        %v303 = vpack.c.b16 %v280, %v279
        %v304 = vpack.c.b16 %v282, %v281
        %v305 = vpack.c.b16 %v284, %v283
        %v306 = vpack.c.b16 %v286, %v285
        %v307 = vpack.c.b16 %v288, %v287
        %v308 = vpack.c.b16 %v290, %v289
        %v309 = vpack.c.b16 %v292, %v291
        %v310 = vpack.c.b16 %v294, %v293
        %v343 = vunpack.c.l.b16 %v215
        %v344 = vunpack.c.l.b16 %v216
        %v345 = vunpack.c.l.b16 %v217
        %v346 = vunpack.c.l.b16 %v218
        %v347 = vunpack.c.l.b16 %v219
        %v348 = vunpack.c.l.b16 %v220
        %v349 = vunpack.c.l.b16 %v221
        %v350 = vunpack.c.l.b16 %v222
        %v351 = vunpack.c.l.b16 %v223
        %v352 = vunpack.c.l.b16 %v224
        %v353 = vunpack.c.l.b16 %v225
        %v354 = vunpack.c.l.b16 %v226
        %v355 = vunpack.c.l.b16 %v227
        %v356 = vunpack.c.l.b16 %v228
        %v357 = vunpack.c.l.b16 %v229
        %v358 = vunpack.c.l.b16 %v230
        %v359 = vpack.c.b16 %v344, %v343
        %v360 = vpack.c.b16 %v346, %v345
        %v361 = vpack.c.b16 %v348, %v347
        %v362 = vpack.c.b16 %v350, %v349
        %v363 = vpack.c.b16 %v352, %v351
        %v364 = vpack.c.b16 %v354, %v353
        %v365 = vpack.c.b16 %v356, %v355
        %v366 = vpack.c.b16 %v358, %v357
        %375 = vmatpush.bf16.msra.mxu0 %v366
        %376 = vmatpush.bf16.msra.mxu0 %v365
        %377 = vmatpush.bf16.msra.mxu0 %v364
        %378 = vmatpush.bf16.msra.mxu0 %v363
        %379 = vmatpush.bf16.msra.mxu0 %v362
        %380 = vmatpush.bf16.msra.mxu0 %v361
        %381 = vmatpush.bf16.msra.mxu0 %v360
        %382 = vmatpush.bf16.msra.mxu0 %v359
        %383 = vmatmul.bf16.gmra.mxu0 %v295
        %v384 = vpop.f32.mrf.mxu0
        %v385 = vadd.f32 0.0, %v384
        %v386 = vpop.f32.mrf.mxu0
        %v387 = vadd.f32 0.0, %v386
        %388 = vmatmul.bf16.gmra.mxu0 %v296
        %v389 = vpop.f32.mrf.mxu0
        %v390 = vadd.f32 0.0, %v389
        %v391 = vpop.f32.mrf.mxu0
        %v392 = vadd.f32 0.0, %v391
        %393 = vmatmul.bf16.gmra.mxu0 %v297
        %v394 = vpop.f32.mrf.mxu0
        %v395 = vadd.f32 0.0, %v394
        %v396 = vpop.f32.mrf.mxu0
        %v397 = vadd.f32 0.0, %v396
        %398 = vmatmul.bf16.gmra.mxu0 %v298
        %v399 = vpop.f32.mrf.mxu0
        %v400 = vadd.f32 0.0, %v399
        %v401 = vpop.f32.mrf.mxu0
        %v402 = vadd.f32 0.0, %v401
        %403 = vmatmul.bf16.gmra.mxu0 %v299
        %v404 = vpop.f32.mrf.mxu0
        %v405 = vadd.f32 0.0, %v404
        %v406 = vpop.f32.mrf.mxu0
        %v407 = vadd.f32 0.0, %v406
        %408 = vmatmul.bf16.gmra.mxu0 %v300
        %v409 = vpop.f32.mrf.mxu0
        %v410 = vadd.f32 0.0, %v409
        %v411 = vpop.f32.mrf.mxu0
        %v412 = vadd.f32 0.0, %v411
        %413 = vmatmul.bf16.gmra.mxu0 %v301
        %v414 = vpop.f32.mrf.mxu0
        %v415 = vadd.f32 0.0, %v414
        %v416 = vpop.f32.mrf.mxu0
        %v417 = vadd.f32 0.0, %v416
        %418 = vmatmul.bf16.gmra.mxu0 %v302
        %v419 = vpop.f32.mrf.mxu0
        %v420 = vadd.f32 0.0, %v419
        %v421 = vpop.f32.mrf.mxu0
        %v422 = vadd.f32 0.0, %v421
        %423 = vmatmul.bf16.gmra.mxu0 %v303
        %v424 = vpop.f32.mrf.mxu0
        %v425 = vadd.f32 0.0, %v424
        %v426 = vpop.f32.mrf.mxu0
        %v427 = vadd.f32 0.0, %v426
        %428 = vmatmul.bf16.gmra.mxu0 %v304
        %v429 = vpop.f32.mrf.mxu0
        %v430 = vadd.f32 0.0, %v429
        %v431 = vpop.f32.mrf.mxu0
        %v432 = vadd.f32 0.0, %v431
        %433 = vmatmul.bf16.gmra.mxu0 %v305
        %v434 = vpop.f32.mrf.mxu0
        %v435 = vadd.f32 0.0, %v434
        %v436 = vpop.f32.mrf.mxu0
        %v437 = vadd.f32 0.0, %v436
        %438 = vmatmul.bf16.gmra.mxu0 %v306
        %v439 = vpop.f32.mrf.mxu0
        %v440 = vadd.f32 0.0, %v439
        %v441 = vpop.f32.mrf.mxu0
        %v442 = vadd.f32 0.0, %v441
        %443 = vmatmul.bf16.gmra.mxu0 %v307
        %v444 = vpop.f32.mrf.mxu0
        %v445 = vadd.f32 0.0, %v444
        %v446 = vpop.f32.mrf.mxu0
        %v447 = vadd.f32 0.0, %v446
        %448 = vmatmul.bf16.gmra.mxu0 %v308
        %v449 = vpop.f32.mrf.mxu0
        %v450 = vadd.f32 0.0, %v449
        %v451 = vpop.f32.mrf.mxu0
        %v452 = vadd.f32 0.0, %v451
        %453 = vmatmul.bf16.gmra.mxu0 %v309
        %v454 = vpop.f32.mrf.mxu0
        %v455 = vadd.f32 0.0, %v454
        %v456 = vpop.f32.mrf.mxu0
        %v457 = vadd.f32 0.0, %v456
        %458 = vmatmul.bf16.gmra.mxu0 %v310
        %v459 = vpop.f32.mrf.mxu0
        %v460 = vadd.f32 0.0, %v459
        %v461 = vpop.f32.mrf.mxu0
        %v462 = vadd.f32 0.0, %v461
        %463 = vdwg.mxu0
        %v464 = vlaneseq
        %v465 = vand.u32 %v464, 127
        %vm466 = vcmp.lt.s32.totalorder %v465, 4
        %v467 = vsel %vm466, %v385, -1e+30
        %v468 = vsel %vm466, %v387, -1e+30
        %v469 = vsel %vm466, %v390, -1e+30
        %v470 = vsel %vm466, %v392, -1e+30
        %v471 = vsel %vm466, %v395, -1e+30
        %v472 = vsel %vm466, %v397, -1e+30
        %v473 = vsel %vm466, %v400, -1e+30
        %v474 = vsel %vm466, %v402, -1e+30
        %v475 = vsel %vm466, %v405, -1e+30
        %v476 = vsel %vm466, %v407, -1e+30
        %v477 = vsel %vm466, %v410, -1e+30
        %v478 = vsel %vm466, %v412, -1e+30
        %v479 = vsel %vm466, %v415, -1e+30
        %v480 = vsel %vm466, %v417, -1e+30
        %v481 = vsel %vm466, %v420, -1e+30
        %v482 = vsel %vm466, %v422, -1e+30
        %v483 = vsel %vm466, %v425, -1e+30
        %v484 = vsel %vm466, %v427, -1e+30
        %v485 = vsel %vm466, %v430, -1e+30
        %v486 = vsel %vm466, %v432, -1e+30
        %v487 = vsel %vm466, %v435, -1e+30
        %v488 = vsel %vm466, %v437, -1e+30
        %v489 = vsel %vm466, %v440, -1e+30
        %v490 = vsel %vm466, %v442, -1e+30
        %v491 = vsel %vm466, %v445, -1e+30
        %v492 = vsel %vm466, %v447, -1e+30
        %v493 = vsel %vm466, %v450, -1e+30
        %v494 = vsel %vm466, %v452, -1e+30
        %v495 = vsel %vm466, %v455, -1e+30
        %v496 = vsel %vm466, %v457, -1e+30
        %v497 = vsel %vm466, %v460, -1e+30
        %v498 = vsel %vm466, %v462, -1e+30
        %499 = vmax.xlane.f32.xlu0 %v467
        %v500 = vpop.xlane.xlu0 %499
        %501 = vmax.xlane.f32.xlu0 %v468
        %v502 = vpop.xlane.xlu0 %501
        %503 = vmax.xlane.f32.xlu0 %v469
        %v504 = vpop.xlane.xlu0 %503
        %505 = vmax.xlane.f32.xlu0 %v470
        %v506 = vpop.xlane.xlu0 %505
        %507 = vmax.xlane.f32.xlu0 %v471
        %v508 = vpop.xlane.xlu0 %507
        %509 = vmax.xlane.f32.xlu0 %v472
        %v510 = vpop.xlane.xlu0 %509
        %511 = vmax.xlane.f32.xlu0 %v473
        %v512 = vpop.xlane.xlu0 %511
        %513 = vmax.xlane.f32.xlu0 %v474
        %v514 = vpop.xlane.xlu0 %513
        %515 = vmax.xlane.f32.xlu0 %v475
        %v516 = vpop.xlane.xlu0 %515
        %517 = vmax.xlane.f32.xlu0 %v476
        %v518 = vpop.xlane.xlu0 %517
        %519 = vmax.xlane.f32.xlu0 %v477
        %v520 = vpop.xlane.xlu0 %519
        %521 = vmax.xlane.f32.xlu0 %v478
        %v522 = vpop.xlane.xlu0 %521
        %523 = vmax.xlane.f32.xlu0 %v479
        %v524 = vpop.xlane.xlu0 %523
        %525 = vmax.xlane.f32.xlu0 %v480
        %v526 = vpop.xlane.xlu0 %525
        %527 = vmax.xlane.f32.xlu0 %v481
        %v528 = vpop.xlane.xlu0 %527
        %529 = vmax.xlane.f32.xlu0 %v482
        %v530 = vpop.xlane.xlu0 %529
        %531 = vmax.xlane.f32.xlu0 %v483
        %v532 = vpop.xlane.xlu0 %531
        %533 = vmax.xlane.f32.xlu0 %v484
        %v534 = vpop.xlane.xlu0 %533
        %535 = vmax.xlane.f32.xlu0 %v485
        %v536 = vpop.xlane.xlu0 %535
        %537 = vmax.xlane.f32.xlu0 %v486
        %v538 = vpop.xlane.xlu0 %537
        %539 = vmax.xlane.f32.xlu0 %v487
        %v540 = vpop.xlane.xlu0 %539
        %541 = vmax.xlane.f32.xlu0 %v488
        %v542 = vpop.xlane.xlu0 %541
        %543 = vmax.xlane.f32.xlu0 %v489
        %v544 = vpop.xlane.xlu0 %543
        %545 = vmax.xlane.f32.xlu0 %v490
        %v546 = vpop.xlane.xlu0 %545
        %547 = vmax.xlane.f32.xlu0 %v491
        %v548 = vpop.xlane.xlu0 %547
        %549 = vmax.xlane.f32.xlu0 %v492
        %v550 = vpop.xlane.xlu0 %549
        %551 = vmax.xlane.f32.xlu0 %v493
        %v552 = vpop.xlane.xlu0 %551
        %553 = vmax.xlane.f32.xlu0 %v494
        %v554 = vpop.xlane.xlu0 %553
        %555 = vmax.xlane.f32.xlu0 %v495
        %v556 = vpop.xlane.xlu0 %555
        %557 = vmax.xlane.f32.xlu0 %v496
        %v558 = vpop.xlane.xlu0 %557
        %559 = vmax.xlane.f32.xlu0 %v497
        %v560 = vpop.xlane.xlu0 %559
        %561 = vmax.xlane.f32.xlu0 %v498
        %v562 = vpop.xlane.xlu0 %561
        %v563 = vsub.f32 %v467, %v500
        %v564 = vsub.f32 %v468, %v502
        %v565 = vsub.f32 %v469, %v504
        %v566 = vsub.f32 %v470, %v506
        %v567 = vsub.f32 %v471, %v508
        %v568 = vsub.f32 %v472, %v510
        %v569 = vsub.f32 %v473, %v512
        %v570 = vsub.f32 %v474, %v514
        %v571 = vsub.f32 %v475, %v516
        %v572 = vsub.f32 %v476, %v518
        %v573 = vsub.f32 %v477, %v520
        %v574 = vsub.f32 %v478, %v522
        %v575 = vsub.f32 %v479, %v524
        %v576 = vsub.f32 %v480, %v526
        %v577 = vsub.f32 %v481, %v528
        %v578 = vsub.f32 %v482, %v530
        %v579 = vsub.f32 %v483, %v532
        %v580 = vsub.f32 %v484, %v534
        %v581 = vsub.f32 %v485, %v536
        %v582 = vsub.f32 %v486, %v538
        %v583 = vsub.f32 %v487, %v540
        %v584 = vsub.f32 %v488, %v542
        %v585 = vsub.f32 %v489, %v544
        %v586 = vsub.f32 %v490, %v546
        %v587 = vsub.f32 %v491, %v548
        %v588 = vsub.f32 %v492, %v550
        %v589 = vsub.f32 %v493, %v552
        %v590 = vsub.f32 %v494, %v554
        %v591 = vsub.f32 %v495, %v556
        %v592 = vsub.f32 %v496, %v558
        %v593 = vsub.f32 %v497, %v560
        %v594 = vsub.f32 %v498, %v562
        %v595 = vmul.f32 %v563, 1.442695
        %v596 = vpow.pop %v595
        %v597 = vmul.f32 %v564, 1.442695
        %v598 = vpow.pop %v597
        %v599 = vmul.f32 %v565, 1.442695
        %v600 = vpow.pop %v599
        %v601 = vmul.f32 %v566, 1.442695
        %v602 = vpow.pop %v601
        %v603 = vmul.f32 %v567, 1.442695
        %v604 = vpow.pop %v603
        %v605 = vmul.f32 %v568, 1.442695
        %v606 = vpow.pop %v605
        %v607 = vmul.f32 %v569, 1.442695
        %v608 = vpow.pop %v607
        %v609 = vmul.f32 %v570, 1.442695
        %v610 = vpow.pop %v609
        %v611 = vmul.f32 %v571, 1.442695
        %v612 = vpow.pop %v611
        %v613 = vmul.f32 %v572, 1.442695
        %v614 = vpow.pop %v613
        %v615 = vmul.f32 %v573, 1.442695
        %v616 = vpow.pop %v615
        %v617 = vmul.f32 %v574, 1.442695
        %v618 = vpow.pop %v617
        %v619 = vmul.f32 %v575, 1.442695
        %v620 = vpow.pop %v619
        %v621 = vmul.f32 %v576, 1.442695
        %v622 = vpow.pop %v621
        %v623 = vmul.f32 %v577, 1.442695
        %v624 = vpow.pop %v623
        %v625 = vmul.f32 %v578, 1.442695
        %v626 = vpow.pop %v625
        %v627 = vmul.f32 %v579, 1.442695
        %v628 = vpow.pop %v627
        %v629 = vmul.f32 %v580, 1.442695
        %v630 = vpow.pop %v629
        %v631 = vmul.f32 %v581, 1.442695
        %v632 = vpow.pop %v631
        %v633 = vmul.f32 %v582, 1.442695
        %v634 = vpow.pop %v633
        %v635 = vmul.f32 %v583, 1.442695
        %v636 = vpow.pop %v635
        %v637 = vmul.f32 %v584, 1.442695
        %v638 = vpow.pop %v637
        %v639 = vmul.f32 %v585, 1.442695
        %v640 = vpow.pop %v639
        %v641 = vmul.f32 %v586, 1.442695
        %v642 = vpow.pop %v641
        %v643 = vmul.f32 %v587, 1.442695
        %v644 = vpow.pop %v643
        %v645 = vmul.f32 %v588, 1.442695
        %v646 = vpow.pop %v645
        %v647 = vmul.f32 %v589, 1.442695
        %v648 = vpow.pop %v647
        %v649 = vmul.f32 %v590, 1.442695
        %v650 = vpow.pop %v649
        %v651 = vmul.f32 %v591, 1.442695
        %v652 = vpow.pop %v651
        %v653 = vmul.f32 %v592, 1.442695
        %v654 = vpow.pop %v653
        %v655 = vmul.f32 %v593, 1.442695
        %v656 = vpow.pop %v655
        %v657 = vmul.f32 %v594, 1.442695
        %v658 = vpow.pop %v657
        %659 = vadd.xlane.f32.xlu0 %v596
        %v660 = vpop.xlane.xlu0 %659
        %661 = vadd.xlane.f32.xlu0 %v598
        %v662 = vpop.xlane.xlu0 %661
        %663 = vadd.xlane.f32.xlu0 %v600
        %v664 = vpop.xlane.xlu0 %663
        %665 = vadd.xlane.f32.xlu0 %v602
        %v666 = vpop.xlane.xlu0 %665
        %667 = vadd.xlane.f32.xlu0 %v604
        %v668 = vpop.xlane.xlu0 %667
        %669 = vadd.xlane.f32.xlu0 %v606
        %v670 = vpop.xlane.xlu0 %669
        %671 = vadd.xlane.f32.xlu0 %v608
        %v672 = vpop.xlane.xlu0 %671
        %673 = vadd.xlane.f32.xlu0 %v610
        %v674 = vpop.xlane.xlu0 %673
        %675 = vadd.xlane.f32.xlu0 %v612
        %v676 = vpop.xlane.xlu0 %675
        %677 = vadd.xlane.f32.xlu0 %v614
        %v678 = vpop.xlane.xlu0 %677
        %679 = vadd.xlane.f32.xlu0 %v616
        %v680 = vpop.xlane.xlu0 %679
        %681 = vadd.xlane.f32.xlu0 %v618
        %v682 = vpop.xlane.xlu0 %681
        %683 = vadd.xlane.f32.xlu0 %v620
        %v684 = vpop.xlane.xlu0 %683
        %685 = vadd.xlane.f32.xlu0 %v622
        %v686 = vpop.xlane.xlu0 %685
        %687 = vadd.xlane.f32.xlu0 %v624
        %v688 = vpop.xlane.xlu0 %687
        %689 = vadd.xlane.f32.xlu0 %v626
        %v690 = vpop.xlane.xlu0 %689
        %691 = vadd.xlane.f32.xlu0 %v628
        %v692 = vpop.xlane.xlu0 %691
        %693 = vadd.xlane.f32.xlu0 %v630
        %v694 = vpop.xlane.xlu0 %693
        %695 = vadd.xlane.f32.xlu0 %v632
        %v696 = vpop.xlane.xlu0 %695
        %697 = vadd.xlane.f32.xlu0 %v634
        %v698 = vpop.xlane.xlu0 %697
        %699 = vadd.xlane.f32.xlu0 %v636
        %v700 = vpop.xlane.xlu0 %699
        %701 = vadd.xlane.f32.xlu0 %v638
        %v702 = vpop.xlane.xlu0 %701
        %703 = vadd.xlane.f32.xlu0 %v640
        %v704 = vpop.xlane.xlu0 %703
        %705 = vadd.xlane.f32.xlu0 %v642
        %v706 = vpop.xlane.xlu0 %705
        %707 = vadd.xlane.f32.xlu0 %v644
        %v708 = vpop.xlane.xlu0 %707
        %709 = vadd.xlane.f32.xlu0 %v646
        %v710 = vpop.xlane.xlu0 %709
        %711 = vadd.xlane.f32.xlu0 %v648
        %v712 = vpop.xlane.xlu0 %711
        %713 = vadd.xlane.f32.xlu0 %v650
        %v714 = vpop.xlane.xlu0 %713
        %715 = vadd.xlane.f32.xlu0 %v652
        %v716 = vpop.xlane.xlu0 %715
        %717 = vadd.xlane.f32.xlu0 %v654
        %v718 = vpop.xlane.xlu0 %717
        %719 = vadd.xlane.f32.xlu0 %v656
        %v720 = vpop.xlane.xlu0 %719
        %721 = vadd.xlane.f32.xlu0 %v658
        %v722 = vpop.xlane.xlu0 %721
        %v723 = vrcp.pop %v660
        %v724 = vmul.f32 %v660, %v723
        %v725 = vsub.f32 1.0, %v724
        %v726 = vmul.f32 %v723, %v725
        %v727 = vadd.f32 %v723, %v726
        %vm728 = vweird.f32 %v660
        %vm729 = vweird.f32 %v723
        %vm730 = vmor %vm728, %vm729
        %v731 = vsel %vm730, %v723, %v727
        %v732 = vand.u32 2147483647, %v660
        %vm733 = vcmp.eq.f32.partialorder %v732, 8.507059e+37
        %v734 = vand.u32 %v660, 2147483648
        %v735 = vor.u32 1.1754944e-38, %v734
        %v736 = vsel %vm733, %v735, %v731
        %v737 = vmul.f32 %v596, %v736
        %v738 = vrcp.pop %v662
        %v739 = vmul.f32 %v662, %v738
        %v740 = vsub.f32 1.0, %v739
        %v741 = vmul.f32 %v738, %v740
        %v742 = vadd.f32 %v738, %v741
        %vm743 = vweird.f32 %v662
        %vm744 = vweird.f32 %v738
        %vm745 = vmor %vm743, %vm744
        %v746 = vsel %vm745, %v738, %v742
        %v747 = vand.u32 2147483647, %v662
        %vm748 = vcmp.eq.f32.partialorder %v747, 8.507059e+37
        %v749 = vand.u32 %v662, 2147483648
        %v750 = vor.u32 1.1754944e-38, %v749
        %v751 = vsel %vm748, %v750, %v746
        %v752 = vmul.f32 %v598, %v751
        %v753 = vrcp.pop %v664
        %v754 = vmul.f32 %v664, %v753
        %v755 = vsub.f32 1.0, %v754
        %v756 = vmul.f32 %v753, %v755
        %v757 = vadd.f32 %v753, %v756
        %vm758 = vweird.f32 %v664
        %vm759 = vweird.f32 %v753
        %vm760 = vmor %vm758, %vm759
        %v761 = vsel %vm760, %v753, %v757
        %v762 = vand.u32 2147483647, %v664
        %vm763 = vcmp.eq.f32.partialorder %v762, 8.507059e+37
        %v764 = vand.u32 %v664, 2147483648
        %v765 = vor.u32 1.1754944e-38, %v764
        %v766 = vsel %vm763, %v765, %v761
        %v767 = vmul.f32 %v600, %v766
        %v768 = vrcp.pop %v666
        %v769 = vmul.f32 %v666, %v768
        %v770 = vsub.f32 1.0, %v769
        %v771 = vmul.f32 %v768, %v770
        %v772 = vadd.f32 %v768, %v771
        %vm773 = vweird.f32 %v666
        %vm774 = vweird.f32 %v768
        %vm775 = vmor %vm773, %vm774
        %v776 = vsel %vm775, %v768, %v772
        %v777 = vand.u32 2147483647, %v666
        %vm778 = vcmp.eq.f32.partialorder %v777, 8.507059e+37
        %v779 = vand.u32 %v666, 2147483648
        %v780 = vor.u32 1.1754944e-38, %v779
        %v781 = vsel %vm778, %v780, %v776
        %v782 = vmul.f32 %v602, %v781
        %v783 = vrcp.pop %v668
        %v784 = vmul.f32 %v668, %v783
        %v785 = vsub.f32 1.0, %v784
        %v786 = vmul.f32 %v783, %v785
        %v787 = vadd.f32 %v783, %v786
        %vm788 = vweird.f32 %v668
        %vm789 = vweird.f32 %v783
        %vm790 = vmor %vm788, %vm789
        %v791 = vsel %vm790, %v783, %v787
        %v792 = vand.u32 2147483647, %v668
        %vm793 = vcmp.eq.f32.partialorder %v792, 8.507059e+37
        %v794 = vand.u32 %v668, 2147483648
        %v795 = vor.u32 1.1754944e-38, %v794
        %v796 = vsel %vm793, %v795, %v791
        %v797 = vmul.f32 %v604, %v796
        %v798 = vrcp.pop %v670
        %v799 = vmul.f32 %v670, %v798
        %v800 = vsub.f32 1.0, %v799
        %v801 = vmul.f32 %v798, %v800
        %v802 = vadd.f32 %v798, %v801
        %vm803 = vweird.f32 %v670
        %vm804 = vweird.f32 %v798
        %vm805 = vmor %vm803, %vm804
        %v806 = vsel %vm805, %v798, %v802
        %v807 = vand.u32 2147483647, %v670
        %vm808 = vcmp.eq.f32.partialorder %v807, 8.507059e+37
        %v809 = vand.u32 %v670, 2147483648
        %v810 = vor.u32 1.1754944e-38, %v809
        %v811 = vsel %vm808, %v810, %v806
        %v812 = vmul.f32 %v606, %v811
        %v813 = vrcp.pop %v672
        %v814 = vmul.f32 %v672, %v813
        %v815 = vsub.f32 1.0, %v814
        %v816 = vmul.f32 %v813, %v815
        %v817 = vadd.f32 %v813, %v816
        %vm818 = vweird.f32 %v672
        %vm819 = vweird.f32 %v813
        %vm820 = vmor %vm818, %vm819
        %v821 = vsel %vm820, %v813, %v817
        %v822 = vand.u32 2147483647, %v672
        %vm823 = vcmp.eq.f32.partialorder %v822, 8.507059e+37
        %v824 = vand.u32 %v672, 2147483648
        %v825 = vor.u32 1.1754944e-38, %v824
        %v826 = vsel %vm823, %v825, %v821
        %v827 = vmul.f32 %v608, %v826
        %v828 = vrcp.pop %v674
        %v829 = vmul.f32 %v674, %v828
        %v830 = vsub.f32 1.0, %v829
        %v831 = vmul.f32 %v828, %v830
        %v832 = vadd.f32 %v828, %v831
        %vm833 = vweird.f32 %v674
        %vm834 = vweird.f32 %v828
        %vm835 = vmor %vm833, %vm834
        %v836 = vsel %vm835, %v828, %v832
        %v837 = vand.u32 2147483647, %v674
        %vm838 = vcmp.eq.f32.partialorder %v837, 8.507059e+37
        %v839 = vand.u32 %v674, 2147483648
        %v840 = vor.u32 1.1754944e-38, %v839
        %v841 = vsel %vm838, %v840, %v836
        %v842 = vmul.f32 %v610, %v841
        %v843 = vrcp.pop %v676
        %v844 = vmul.f32 %v676, %v843
        %v845 = vsub.f32 1.0, %v844
        %v846 = vmul.f32 %v843, %v845
        %v847 = vadd.f32 %v843, %v846
        %vm848 = vweird.f32 %v676
        %vm849 = vweird.f32 %v843
        %vm850 = vmor %vm848, %vm849
        %v851 = vsel %vm850, %v843, %v847
        %v852 = vand.u32 2147483647, %v676
        %vm853 = vcmp.eq.f32.partialorder %v852, 8.507059e+37
        %v854 = vand.u32 %v676, 2147483648
        %v855 = vor.u32 1.1754944e-38, %v854
        %v856 = vsel %vm853, %v855, %v851
        %v857 = vmul.f32 %v612, %v856
        %v858 = vrcp.pop %v678
        %v859 = vmul.f32 %v678, %v858
        %v860 = vsub.f32 1.0, %v859
        %v861 = vmul.f32 %v858, %v860
        %v862 = vadd.f32 %v858, %v861
        %vm863 = vweird.f32 %v678
        %vm864 = vweird.f32 %v858
        %vm865 = vmor %vm863, %vm864
        %v866 = vsel %vm865, %v858, %v862
        %v867 = vand.u32 2147483647, %v678
        %vm868 = vcmp.eq.f32.partialorder %v867, 8.507059e+37
        %v869 = vand.u32 %v678, 2147483648
        %v870 = vor.u32 1.1754944e-38, %v869
        %v871 = vsel %vm868, %v870, %v866
        %v872 = vmul.f32 %v614, %v871
        %v873 = vrcp.pop %v680
        %v874 = vmul.f32 %v680, %v873
        %v875 = vsub.f32 1.0, %v874
        %v876 = vmul.f32 %v873, %v875
        %v877 = vadd.f32 %v873, %v876
        %vm878 = vweird.f32 %v680
        %vm879 = vweird.f32 %v873
        %vm880 = vmor %vm878, %vm879
        %v881 = vsel %vm880, %v873, %v877
        %v882 = vand.u32 2147483647, %v680
        %vm883 = vcmp.eq.f32.partialorder %v882, 8.507059e+37
        %v884 = vand.u32 %v680, 2147483648
        %v885 = vor.u32 1.1754944e-38, %v884
        %v886 = vsel %vm883, %v885, %v881
        %v887 = vmul.f32 %v616, %v886
        %v888 = vrcp.pop %v682
        %v889 = vmul.f32 %v682, %v888
        %v890 = vsub.f32 1.0, %v889
        %v891 = vmul.f32 %v888, %v890
        %v892 = vadd.f32 %v888, %v891
        %vm893 = vweird.f32 %v682
        %vm894 = vweird.f32 %v888
        %vm895 = vmor %vm893, %vm894
        %v896 = vsel %vm895, %v888, %v892
        %v897 = vand.u32 2147483647, %v682
        %vm898 = vcmp.eq.f32.partialorder %v897, 8.507059e+37
        %v899 = vand.u32 %v682, 2147483648
        %v900 = vor.u32 1.1754944e-38, %v899
        %v901 = vsel %vm898, %v900, %v896
        %v902 = vmul.f32 %v618, %v901
        %v903 = vrcp.pop %v684
        %v904 = vmul.f32 %v684, %v903
        %v905 = vsub.f32 1.0, %v904
        %v906 = vmul.f32 %v903, %v905
        %v907 = vadd.f32 %v903, %v906
        %vm908 = vweird.f32 %v684
        %vm909 = vweird.f32 %v903
        %vm910 = vmor %vm908, %vm909
        %v911 = vsel %vm910, %v903, %v907
        %v912 = vand.u32 2147483647, %v684
        %vm913 = vcmp.eq.f32.partialorder %v912, 8.507059e+37
        %v914 = vand.u32 %v684, 2147483648
        %v915 = vor.u32 1.1754944e-38, %v914
        %v916 = vsel %vm913, %v915, %v911
        %v917 = vmul.f32 %v620, %v916
        %v918 = vrcp.pop %v686
        %v919 = vmul.f32 %v686, %v918
        %v920 = vsub.f32 1.0, %v919
        %v921 = vmul.f32 %v918, %v920
        %v922 = vadd.f32 %v918, %v921
        %vm923 = vweird.f32 %v686
        %vm924 = vweird.f32 %v918
        %vm925 = vmor %vm923, %vm924
        %v926 = vsel %vm925, %v918, %v922
        %v927 = vand.u32 2147483647, %v686
        %vm928 = vcmp.eq.f32.partialorder %v927, 8.507059e+37
        %v929 = vand.u32 %v686, 2147483648
        %v930 = vor.u32 1.1754944e-38, %v929
        %v931 = vsel %vm928, %v930, %v926
        %v932 = vmul.f32 %v622, %v931
        %v933 = vrcp.pop %v688
        %v934 = vmul.f32 %v688, %v933
        %v935 = vsub.f32 1.0, %v934
        %v936 = vmul.f32 %v933, %v935
        %v937 = vadd.f32 %v933, %v936
        %vm938 = vweird.f32 %v688
        %vm939 = vweird.f32 %v933
        %vm940 = vmor %vm938, %vm939
        %v941 = vsel %vm940, %v933, %v937
        %v942 = vand.u32 2147483647, %v688
        %vm943 = vcmp.eq.f32.partialorder %v942, 8.507059e+37
        %v944 = vand.u32 %v688, 2147483648
        %v945 = vor.u32 1.1754944e-38, %v944
        %v946 = vsel %vm943, %v945, %v941
        %v947 = vmul.f32 %v624, %v946
        %v948 = vrcp.pop %v690
        %v949 = vmul.f32 %v690, %v948
        %v950 = vsub.f32 1.0, %v949
        %v951 = vmul.f32 %v948, %v950
        %v952 = vadd.f32 %v948, %v951
        %vm953 = vweird.f32 %v690
        %vm954 = vweird.f32 %v948
        %vm955 = vmor %vm953, %vm954
        %v956 = vsel %vm955, %v948, %v952
        %v957 = vand.u32 2147483647, %v690
        %vm958 = vcmp.eq.f32.partialorder %v957, 8.507059e+37
        %v959 = vand.u32 %v690, 2147483648
        %v960 = vor.u32 1.1754944e-38, %v959
        %v961 = vsel %vm958, %v960, %v956
        %v962 = vmul.f32 %v626, %v961
        %v963 = vrcp.pop %v692
        %v964 = vmul.f32 %v692, %v963
        %v965 = vsub.f32 1.0, %v964
        %v966 = vmul.f32 %v963, %v965
        %v967 = vadd.f32 %v963, %v966
        %vm968 = vweird.f32 %v692
        %vm969 = vweird.f32 %v963
        %vm970 = vmor %vm968, %vm969
        %v971 = vsel %vm970, %v963, %v967
        %v972 = vand.u32 2147483647, %v692
        %vm973 = vcmp.eq.f32.partialorder %v972, 8.507059e+37
        %v974 = vand.u32 %v692, 2147483648
        %v975 = vor.u32 1.1754944e-38, %v974
        %v976 = vsel %vm973, %v975, %v971
        %v977 = vmul.f32 %v628, %v976
        %v978 = vrcp.pop %v694
        %v979 = vmul.f32 %v694, %v978
        %v980 = vsub.f32 1.0, %v979
        %v981 = vmul.f32 %v978, %v980
        %v982 = vadd.f32 %v978, %v981
        %vm983 = vweird.f32 %v694
        %vm984 = vweird.f32 %v978
        %vm985 = vmor %vm983, %vm984
        %v986 = vsel %vm985, %v978, %v982
        %v987 = vand.u32 2147483647, %v694
        %vm988 = vcmp.eq.f32.partialorder %v987, 8.507059e+37
        %v989 = vand.u32 %v694, 2147483648
        %v990 = vor.u32 1.1754944e-38, %v989
        %v991 = vsel %vm988, %v990, %v986
        %v992 = vmul.f32 %v630, %v991
        %v993 = vrcp.pop %v696
        %v994 = vmul.f32 %v696, %v993
        %v995 = vsub.f32 1.0, %v994
        %v996 = vmul.f32 %v993, %v995
        %v997 = vadd.f32 %v993, %v996
        %vm998 = vweird.f32 %v696
        %vm999 = vweird.f32 %v993
        %vm1000 = vmor %vm998, %vm999
        %v1001 = vsel %vm1000, %v993, %v997
        %v1002 = vand.u32 2147483647, %v696
        %vm1003 = vcmp.eq.f32.partialorder %v1002, 8.507059e+37
        %v1004 = vand.u32 %v696, 2147483648
        %v1005 = vor.u32 1.1754944e-38, %v1004
        %v1006 = vsel %vm1003, %v1005, %v1001
        %v1007 = vmul.f32 %v632, %v1006
        %v1008 = vrcp.pop %v698
        %v1009 = vmul.f32 %v698, %v1008
        %v1010 = vsub.f32 1.0, %v1009
        %v1011 = vmul.f32 %v1008, %v1010
        %v1012 = vadd.f32 %v1008, %v1011
        %vm1013 = vweird.f32 %v698
        %vm1014 = vweird.f32 %v1008
        %vm1015 = vmor %vm1013, %vm1014
        %v1016 = vsel %vm1015, %v1008, %v1012
        %v1017 = vand.u32 2147483647, %v698
        %vm1018 = vcmp.eq.f32.partialorder %v1017, 8.507059e+37
        %v1019 = vand.u32 %v698, 2147483648
        %v1020 = vor.u32 1.1754944e-38, %v1019
        %v1021 = vsel %vm1018, %v1020, %v1016
        %v1022 = vmul.f32 %v634, %v1021
        %v1023 = vrcp.pop %v700
        %v1024 = vmul.f32 %v700, %v1023
        %v1025 = vsub.f32 1.0, %v1024
        %v1026 = vmul.f32 %v1023, %v1025
        %v1027 = vadd.f32 %v1023, %v1026
        %vm1028 = vweird.f32 %v700
        %vm1029 = vweird.f32 %v1023
        %vm1030 = vmor %vm1028, %vm1029
        %v1031 = vsel %vm1030, %v1023, %v1027
        %v1032 = vand.u32 2147483647, %v700
        %vm1033 = vcmp.eq.f32.partialorder %v1032, 8.507059e+37
        %v1034 = vand.u32 %v700, 2147483648
        %v1035 = vor.u32 1.1754944e-38, %v1034
        %v1036 = vsel %vm1033, %v1035, %v1031
        %v1037 = vmul.f32 %v636, %v1036
        %v1038 = vrcp.pop %v702
        %v1039 = vmul.f32 %v702, %v1038
        %v1040 = vsub.f32 1.0, %v1039
        %v1041 = vmul.f32 %v1038, %v1040
        %v1042 = vadd.f32 %v1038, %v1041
        %vm1043 = vweird.f32 %v702
        %vm1044 = vweird.f32 %v1038
        %vm1045 = vmor %vm1043, %vm1044
        %v1046 = vsel %vm1045, %v1038, %v1042
        %v1047 = vand.u32 2147483647, %v702
        %vm1048 = vcmp.eq.f32.partialorder %v1047, 8.507059e+37
        %v1049 = vand.u32 %v702, 2147483648
        %v1050 = vor.u32 1.1754944e-38, %v1049
        %v1051 = vsel %vm1048, %v1050, %v1046
        %v1052 = vmul.f32 %v638, %v1051
        %v1053 = vrcp.pop %v704
        %v1054 = vmul.f32 %v704, %v1053
        %v1055 = vsub.f32 1.0, %v1054
        %v1056 = vmul.f32 %v1053, %v1055
        %v1057 = vadd.f32 %v1053, %v1056
        %vm1058 = vweird.f32 %v704
        %vm1059 = vweird.f32 %v1053
        %vm1060 = vmor %vm1058, %vm1059
        %v1061 = vsel %vm1060, %v1053, %v1057
        %v1062 = vand.u32 2147483647, %v704
        %vm1063 = vcmp.eq.f32.partialorder %v1062, 8.507059e+37
        %v1064 = vand.u32 %v704, 2147483648
        %v1065 = vor.u32 1.1754944e-38, %v1064
        %v1066 = vsel %vm1063, %v1065, %v1061
        %v1067 = vmul.f32 %v640, %v1066
        %v1068 = vrcp.pop %v706
        %v1069 = vmul.f32 %v706, %v1068
        %v1070 = vsub.f32 1.0, %v1069
        %v1071 = vmul.f32 %v1068, %v1070
        %v1072 = vadd.f32 %v1068, %v1071
        %vm1073 = vweird.f32 %v706
        %vm1074 = vweird.f32 %v1068
        %vm1075 = vmor %vm1073, %vm1074
        %v1076 = vsel %vm1075, %v1068, %v1072
        %v1077 = vand.u32 2147483647, %v706
        %vm1078 = vcmp.eq.f32.partialorder %v1077, 8.507059e+37
        %v1079 = vand.u32 %v706, 2147483648
        %v1080 = vor.u32 1.1754944e-38, %v1079
        %v1081 = vsel %vm1078, %v1080, %v1076
        %v1082 = vmul.f32 %v642, %v1081
        %v1083 = vrcp.pop %v708
        %v1084 = vmul.f32 %v708, %v1083
        %v1085 = vsub.f32 1.0, %v1084
        %v1086 = vmul.f32 %v1083, %v1085
        %v1087 = vadd.f32 %v1083, %v1086
        %vm1088 = vweird.f32 %v708
        %vm1089 = vweird.f32 %v1083
        %vm1090 = vmor %vm1088, %vm1089
        %v1091 = vsel %vm1090, %v1083, %v1087
        %v1092 = vand.u32 2147483647, %v708
        %vm1093 = vcmp.eq.f32.partialorder %v1092, 8.507059e+37
        %v1094 = vand.u32 %v708, 2147483648
        %v1095 = vor.u32 1.1754944e-38, %v1094
        %v1096 = vsel %vm1093, %v1095, %v1091
        %v1097 = vmul.f32 %v644, %v1096
        %v1098 = vrcp.pop %v710
        %v1099 = vmul.f32 %v710, %v1098
        %v1100 = vsub.f32 1.0, %v1099
        %v1101 = vmul.f32 %v1098, %v1100
        %v1102 = vadd.f32 %v1098, %v1101
        %vm1103 = vweird.f32 %v710
        %vm1104 = vweird.f32 %v1098
        %vm1105 = vmor %vm1103, %vm1104
        %v1106 = vsel %vm1105, %v1098, %v1102
        %v1107 = vand.u32 2147483647, %v710
        %vm1108 = vcmp.eq.f32.partialorder %v1107, 8.507059e+37
        %v1109 = vand.u32 %v710, 2147483648
        %v1110 = vor.u32 1.1754944e-38, %v1109
        %v1111 = vsel %vm1108, %v1110, %v1106
        %v1112 = vmul.f32 %v646, %v1111
        %v1113 = vrcp.pop %v712
        %v1114 = vmul.f32 %v712, %v1113
        %v1115 = vsub.f32 1.0, %v1114
        %v1116 = vmul.f32 %v1113, %v1115
        %v1117 = vadd.f32 %v1113, %v1116
        %vm1118 = vweird.f32 %v712
        %vm1119 = vweird.f32 %v1113
        %vm1120 = vmor %vm1118, %vm1119
        %v1121 = vsel %vm1120, %v1113, %v1117
        %v1122 = vand.u32 2147483647, %v712
        %vm1123 = vcmp.eq.f32.partialorder %v1122, 8.507059e+37
        %v1124 = vand.u32 %v712, 2147483648
        %v1125 = vor.u32 1.1754944e-38, %v1124
        %v1126 = vsel %vm1123, %v1125, %v1121
        %v1127 = vmul.f32 %v648, %v1126
        %v1128 = vrcp.pop %v714
        %v1129 = vmul.f32 %v714, %v1128
        %v1130 = vsub.f32 1.0, %v1129
        %v1131 = vmul.f32 %v1128, %v1130
        %v1132 = vadd.f32 %v1128, %v1131
        %vm1133 = vweird.f32 %v714
        %vm1134 = vweird.f32 %v1128
        %vm1135 = vmor %vm1133, %vm1134
        %v1136 = vsel %vm1135, %v1128, %v1132
        %v1137 = vand.u32 2147483647, %v714
        %vm1138 = vcmp.eq.f32.partialorder %v1137, 8.507059e+37
        %v1139 = vand.u32 %v714, 2147483648
        %v1140 = vor.u32 1.1754944e-38, %v1139
        %v1141 = vsel %vm1138, %v1140, %v1136
        %v1142 = vmul.f32 %v650, %v1141
        %v1143 = vrcp.pop %v716
        %v1144 = vmul.f32 %v716, %v1143
        %v1145 = vsub.f32 1.0, %v1144
        %v1146 = vmul.f32 %v1143, %v1145
        %v1147 = vadd.f32 %v1143, %v1146
        %vm1148 = vweird.f32 %v716
        %vm1149 = vweird.f32 %v1143
        %vm1150 = vmor %vm1148, %vm1149
        %v1151 = vsel %vm1150, %v1143, %v1147
        %v1152 = vand.u32 2147483647, %v716
        %vm1153 = vcmp.eq.f32.partialorder %v1152, 8.507059e+37
        %v1154 = vand.u32 %v716, 2147483648
        %v1155 = vor.u32 1.1754944e-38, %v1154
        %v1156 = vsel %vm1153, %v1155, %v1151
        %v1157 = vmul.f32 %v652, %v1156
        %v1158 = vrcp.pop %v718
        %v1159 = vmul.f32 %v718, %v1158
        %v1160 = vsub.f32 1.0, %v1159
        %v1161 = vmul.f32 %v1158, %v1160
        %v1162 = vadd.f32 %v1158, %v1161
        %vm1163 = vweird.f32 %v718
        %vm1164 = vweird.f32 %v1158
        %vm1165 = vmor %vm1163, %vm1164
        %v1166 = vsel %vm1165, %v1158, %v1162
        %v1167 = vand.u32 2147483647, %v718
        %vm1168 = vcmp.eq.f32.partialorder %v1167, 8.507059e+37
        %v1169 = vand.u32 %v718, 2147483648
        %v1170 = vor.u32 1.1754944e-38, %v1169
        %v1171 = vsel %vm1168, %v1170, %v1166
        %v1172 = vmul.f32 %v654, %v1171
        %v1173 = vrcp.pop %v720
        %v1174 = vmul.f32 %v720, %v1173
        %v1175 = vsub.f32 1.0, %v1174
        %v1176 = vmul.f32 %v1173, %v1175
        %v1177 = vadd.f32 %v1173, %v1176
        %vm1178 = vweird.f32 %v720
        %vm1179 = vweird.f32 %v1173
        %vm1180 = vmor %vm1178, %vm1179
        %v1181 = vsel %vm1180, %v1173, %v1177
        %v1182 = vand.u32 2147483647, %v720
        %vm1183 = vcmp.eq.f32.partialorder %v1182, 8.507059e+37
        %v1184 = vand.u32 %v720, 2147483648
        %v1185 = vor.u32 1.1754944e-38, %v1184
        %v1186 = vsel %vm1183, %v1185, %v1181
        %v1187 = vmul.f32 %v656, %v1186
        %v1188 = vrcp.pop %v722
        %v1189 = vmul.f32 %v722, %v1188
        %v1190 = vsub.f32 1.0, %v1189
        %v1191 = vmul.f32 %v1188, %v1190
        %v1192 = vadd.f32 %v1188, %v1191
        %vm1193 = vweird.f32 %v722
        %vm1194 = vweird.f32 %v1188
        %vm1195 = vmor %vm1193, %vm1194
        %v1196 = vsel %vm1195, %v1188, %v1192
        %v1197 = vand.u32 2147483647, %v722
        %vm1198 = vcmp.eq.f32.partialorder %v1197, 8.507059e+37
        %v1199 = vand.u32 %v722, 2147483648
        %v1200 = vor.u32 1.1754944e-38, %v1199
        %v1201 = vsel %vm1198, %v1200, %v1196
        %v1202 = vmul.f32 %v658, %v1201
        %1203 = vst [vmem:[%s180] sm:$0xff] %v737
        %1204 = vst [vmem:[%s180 + $0x8] sm:$0xff] %v752
        %1205 = vst [vmem:[%s180 + $0x10] sm:$0xff] %v767
        %1206 = vst [vmem:[%s180 + $0x18] sm:$0xff] %v782
        %1207 = vst [vmem:[%s180 + $0x20] sm:$0xff] %v797
        %1208 = vst [vmem:[%s180 + $0x28] sm:$0xff] %v812
        %1209 = vst [vmem:[%s180 + $0x30] sm:$0xff] %v827
        %1210 = vst [vmem:[%s180 + $0x38] sm:$0xff] %v842
        %1211 = vst [vmem:[%s180 + $0x40] sm:$0xff] %v857
        %1212 = vst [vmem:[%s180 + $0x48] sm:$0xff] %v872
        %1213 = vst [vmem:[%s180 + $0x50] sm:$0xff] %v887
        %1214 = vst [vmem:[%s180 + $0x58] sm:$0xff] %v902
        %1215 = vst [vmem:[%s180 + $0x60] sm:$0xff] %v917
        %1216 = vst [vmem:[%s180 + $0x68] sm:$0xff] %v932
        %1217 = vst [vmem:[%s180 + $0x70] sm:$0xff] %v947
        %1218 = vst [vmem:[%s180 + $0x78] sm:$0xff] %v962
        %1219 = vst [vmem:[%s180 + $0x80] sm:$0xff] %v977
        %1220 = vst [vmem:[%s180 + $0x88] sm:$0xff] %v992
        %1221 = vst [vmem:[%s180 + $0x90] sm:$0xff] %v1007
        %1222 = vst [vmem:[%s180 + $0x98] sm:$0xff] %v1022
        %1223 = vst [vmem:[%s180 + $0xa0] sm:$0xff] %v1037
        %1224 = vst [vmem:[%s180 + $0xa8] sm:$0xff] %v1052
        %1225 = vst [vmem:[%s180 + $0xb0] sm:$0xff] %v1067
        %1226 = vst [vmem:[%s180 + $0xb8] sm:$0xff] %v1082
        %1227 = vst [vmem:[%s180 + $0xc0] sm:$0xff] %v1097
        %1228 = vst [vmem:[%s180 + $0xc8] sm:$0xff] %v1112
        %1229 = vst [vmem:[%s180 + $0xd0] sm:$0xff] %v1127
        %1230 = vst [vmem:[%s180 + $0xd8] sm:$0xff] %v1142
        %1231 = vst [vmem:[%s180 + $0xe0] sm:$0xff] %v1157
        %1232 = vst [vmem:[%s180 + $0xe8] sm:$0xff] %v1172
        %1233 = vst [vmem:[%s180 + $0xf0] sm:$0xff] %v1187
        %1234 = vst [vmem:[%s180 + $0xf8] sm:$0xff] %v1202
        %s1235 = sand.u32 %s75, 1
        %s1236 = scalar_lea.sflag [#allocation4], %s1235
        %s1237 = sand.u32 %s75, 1
        %s1238 = smul.addr %s1237, 256
        %s1239 = scalar_lea.vmem [#allocation7], %s1238
        // Predicated region
        $region37: #{tpu_custom_call.1} parent=27 // pred_check
          %p1240 = pneg %p85
        $region38: #{tpu_custom_call.1} parent=27 // pred_check_branch
          %1242 = sbr.rel (%p1240) target = $region40
        $region39: #{tpu_custom_call.1} parent=27 // pred_region
          %s1243 = smul.u32 32, %s20
          %1245 = vsyncadd %s1236, 0
          %s1246 = smul.addr %s1243, 8
          %s1247 = scalar_lea.hbm %s2, %s1246
          %s1248 = sshll.u32 %s1239, 4
          %s1249 = int_to_ptr.vmem [resolvable:$true] %s1248
          %s1250 = sshll.u32 %s1247, 4
          %s1251 = int_to_ptr.hbm [resolvable:$true] %s1250
          %1256 = dma.vmem_to_hbm [thread:$0]  %s1249, 4096, %s1251, %s1236, 128, 128, 8
        $region40: #{tpu_custom_call.1} parent=27 // pred_fallthru
          _
      $region28: #{tpu_custom_call.1} parent=5 // pred_fallthru
        _
      %p1257 = scmp.le.s32.totalorder 2, %s15
      // Predicated region
      $region41: #{tpu_custom_call.1} parent=5 // pred_check
        %p1258 = pneg %p1257
      $region42: #{tpu_custom_call.1} parent=5 // pred_check_branch
        %1260 = sbr.rel (%p1258) target = $region44
      $region43: #{tpu_custom_call.1} parent=5 // pred_region
        %s1261 = ssub.s32 %s15, 2
        // Predicated region
        $region45: #{tpu_custom_call.1} parent=43 // pred_check
          %p1262 = pneg %p91
        $region46: #{tpu_custom_call.1} parent=43 // pred_check_branch
          %1264 = sbr.rel (%p1262) target = $region48
        $region47: #{tpu_custom_call.1} parent=43 // pred_region
          %s1265 = sand.u32 %s76, 1
          %s1266 = scalar_lea.sflag [#allocation4], %s1265
          %s1267 = sand.u32 %s76, 1
          %s1268 = smul.addr %s1267, 256
          %s1269 = scalar_lea.vmem [#allocation7], %s1268
          %1271 = dma.done %s1266, 4096
        $region48: #{tpu_custom_call.1} parent=43 // pred_fallthru
          _
      $region44: #{tpu_custom_call.1} parent=5 // pred_fallthru
        _
    $region6: #{tpu_custom_call.1} parent=1 // loop_footer
      %s19 = sadd.s32 1, %s15
    $region7: #{tpu_custom_call.1} parent=1 // loop_footer_branch
      %14 = sbr.rel target = $region3
    $region8: #{tpu_custom_call.1} parent=1 // loop_exit
      _
    %1272 = vsyncpa [#allocation3], 1
    %s1273 = scalar_lea.sflag [#allocation3], 1
    %1274 = vsyncpa %s1273, 1
    %1275 = vsyncpa [#allocation6], 1
    %1276 = vsyncpa [#allocation4], 1
    %s1277 = scalar_lea.sflag [#allocation4], 1
    %1278 = vsyncpa %s1277, 1

</llo_original>
